<compile_context>
chip_gen: v6e
topology: v6e:2x2x1
jax: 0.10.0
libtpu: 0.0.40
codegen_flags: <defaults>
</compile_context>

<pallas_src>
import functools

import jax
import jax.numpy as jnp
from jax.experimental import pallas as pl
from jax.experimental.pallas import tpu as pltpu


# --------------------------------------------------------------------------- kernel
def _distill_kernel(x_ref, w_ref, b_ref, out_ref, kd_ref, labels_ref,
                    loss_ref, acc_ref, *, alpha, tau, inv_b, inv_bk):
    k = pl.program_id(1)

    # ---- init: fold teacher bias into the f32 accumulator (saves an epilogue add) ----
    @pl.when(k == 0)
    def _():
        acc_ref[...] = jnp.broadcast_to(b_ref[...], acc_ref.shape)

    # ---- streaming teacher matmul: bf16 operands, f32 MXU accumulation ----
    acc_ref[...] += jnp.dot(x_ref[...], w_ref[...],
                            preferred_element_type=jnp.float32)

    # ---- epilogue (CE + soft KL + blend), once per batch tile ----
    @pl.when(k == pl.num_programs(1) - 1)
    def _():
        teacher = acc_ref[...]                               # [tb,Kp] f32 (bias incl.)
        outputs = out_ref[...].astype(jnp.float32)           # class-token logits
        kd = kd_ref[...].astype(jnp.float32)                 # dist-token logits
        labels = labels_ref[...]                             # [tb,1] int32

        # base criterion: per-row CE = logsumexp(outputs) - outputs[label]
        m_o = jnp.max(outputs, axis=-1, keepdims=True)
        lse_o = m_o + jnp.log(jnp.sum(jnp.exp(outputs - m_o), axis=-1, keepdims=True))
        iota = jax.lax.broadcasted_iota(jnp.int32, outputs.shape, 1)
        lbl_logit = jnp.sum(jnp.where(iota == labels, outputs, 0.0),
                            axis=-1, keepdims=True)
        row_base = lse_o - lbl_logit                          # [tb,1]

        # soft distillation: sum KL(softmax(teacher/T) || softmax(kd/T)) * T^2 / (B*K)
        inv_t = 1.0 / tau
        zt = teacher * inv_t
        m_t = jnp.max(zt, axis=-1, keepdims=True)
        e_t = jnp.exp(zt - m_t)                               # single exp pass, reused
        s_t = jnp.sum(e_t, axis=-1, keepdims=True)
        p_t = e_t / s_t                                       # teacher softmax probs
        lp_t = (zt - m_t) - jnp.log(s_t)                      # teacher log-softmax

        zs = kd * inv_t
        m_s = jnp.max(zs, axis=-1, keepdims=True)
        lp_s = (zs - m_s) - jnp.log(jnp.sum(jnp.exp(zs - m_s), axis=-1, keepdims=True))

        row_kl = jnp.sum(p_t * (lp_t - lp_s), axis=-1, keepdims=True)

        # per-row partial of the blended loss; wrapper sums over rows (loss is linear).
        loss_ref[...] = ((1.0 - alpha) * inv_b * row_base
                         + alpha * (tau * tau) * inv_bk * row_kl)
        # TODO(synk): 'hard' / 'none' distillation_type branches are not wired here;
        #             only the 'soft' path (DeiT default) is implemented.


# --------------------------------------------------------------- device / tile selection
def _tpu_vmem_and_cores():
    """Per-core VMEM capacity and TensorCores-per-chip, with conservative fallbacks."""
    vmem_bytes, num_cores = 64 << 20, 0          # conservative defaults (v7x-sized VMEM)
    try:
        info = pltpu.get_tpu_info()
        v = int(getattr(info, "vmem_capacity_bytes", 0) or 0)
        if v:
            vmem_bytes = v
        for attr in ("num_cores", "core_count", "tensor_cores_per_chip"):
            c = getattr(info, attr, None)
            if c:
                num_cores = int(c)
                break
    except Exception:
        pass
    if not num_cores:
        num_cores = int(getattr(jax.devices()[0], "num_cores", 0) or 0)
    if not num_cores:
        # Heuristic: v7x exposes 64 MiB VMEM per TensorCore and has 2 TCs/chip;
        # v5e/v6e have 128 MiB and a single TC.
        num_cores = 2 if vmem_bytes <= (64 << 20) else 1
    return vmem_bytes, num_cores


def _select_tiles(B, D, K, *, vmem_bytes, num_cores):
    """Pick (tb, td): the biggest batch tile the VMEM budget allows (nb == num_cores if
    possible, else nb == 1, else the largest 16/8-multiple divisor), then the biggest td."""
    budget = (vmem_bytes * 3) // 4               # headroom for compiler scratch

    def resident_bytes(tb, td):
        return (2 * tb * td * 2                  # x blocks   (bf16, double-buffered)
                + 2 * td * K * 2                 # W blocks   (bf16, double-buffered)
                + tb * K * 4                     # f32 teacher-logit accumulator
                + 2 * 2 * tb * K * 2             # class/dist student logits (bf16, 2-buf)
                + 2 * K * 4                      # bias
                + 4 * tb * 4                     # labels + per-row loss blocks
                + (2 << 20))                     # slack

    def best_td(tb):
        cands = sorted({t for t in range(128, D, 128) if D % t == 0} | {D})
        best = None
        for t in cands:
            if resident_bytes(tb, t) <= budget:
                best = t
        return best

    tb_cands = []
    if num_cores > 1 and B % num_cores == 0 and (B // num_cores) % 16 == 0:
        tb_cands.append(B // num_cores)          # one batch tile per TensorCore
    if B not in tb_cands:
        tb_cands.append(B)                       # stream W exactly once
    tb_cands += [t for t in range((B // 16) * 16, 0, -16)
                 if B % t == 0 and t not in tb_cands]
    tb_cands += [t for t in range((B // 8) * 8, 0, -8)
                 if B % t == 0 and t not in tb_cands]

    for tb in tb_cands:
        td = best_td(tb)
        if td is not None:
            return tb, td
    raise ValueError(f"No (tb, td) tiling fits VMEM budget {budget} "
                     f"for B={B}, D={D}, K={K}")


# --------------------------------------------------------------------------- wrapper
def distillation_loss(inputs, outputs, outputs_kd, labels, teacher_w, teacher_b,
                      *, alpha=0.5, tau=3.0, tb=None, td=None):
    """Soft distillation loss.
    inputs: [B,C,H,W]; outputs / outputs_kd: [B,K]; labels: [B] int;
    teacher (linear classifier head): teacher_w [D,K], teacher_b [K]."""
    B = inputs.shape[0]
    K = outputs.shape[1]
    x2d = inputs.reshape(B, -1)
    D = x2d.shape[1]

    # Pad the class dim to a lane/MXU-friendly multiple of 128; padded columns get a
    # -1e30 logit (teacher via the bias, students via padded columns) so every softmax
    # assigns them exactly zero probability.
    K_pad = ((K + 127) // 128) * 128
    if K_pad != K:
        pad = K_pad - K
        neg_cols = jnp.full((B, pad), -1e30, jnp.float32)
        teacher_w = jnp.concatenate(
            [teacher_w, jnp.zeros((D, pad), teacher_w.dtype)], axis=1)
        teacher_b = jnp.concatenate(
            [teacher_b.astype(jnp.float32), jnp.full((pad,), -1e30, jnp.float32)])
        outputs = jnp.concatenate([outputs.astype(jnp.float32), neg_cols], axis=1)
        outputs_kd = jnp.concatenate([outputs_kd.astype(jnp.float32), neg_cols], axis=1)

    # Big streams (x, W, student logits) in bf16; bias stays f32; all math in f32.
    x2d = x2d.astype(jnp.bfloat16)
    w = teacher_w.astype(jnp.bfloat16)
    b2d = teacher_b.astype(jnp.float32).reshape(1, K_pad)
    out_bf = outputs.astype(jnp.bfloat16)
    kd_bf = outputs_kd.astype(jnp.bfloat16)
    labels2d = labels.reshape(B, 1).astype(jnp.int32)

    # VMEM-budget-driven tiling (per TPU generation).
    vmem_bytes, num_cores = _tpu_vmem_and_cores()
    tb_def, td_def = _select_tiles(B, D, K_pad, vmem_bytes=vmem_bytes,
                                   num_cores=num_cores)
    tb = tb_def if tb is None else tb
    td = td_def if td is None else td
    assert B % tb == 0 and (tb == B or tb % 8 == 0), (B, tb)
    assert D % td == 0 and (td == D or td % 128 == 0), (D, td)
    nb, nk = B // tb, D // td

    kernel = functools.partial(_distill_kernel, alpha=float(alpha), tau=float(tau),
                               inv_b=1.0 / B, inv_bk=1.0 / (B * K))

    grid_spec = pltpu.PrefetchScalarGridSpec(
        num_scalar_prefetch=0,
        grid=(nb, nk),
        in_specs=[
            pl.BlockSpec((tb, td), lambda i, k: (i, k)),        # x            (bf16)
            pl.BlockSpec((td, K_pad), lambda i, k: (k, 0)),     # teacher W    (bf16)
            pl.BlockSpec((1, K_pad), lambda i, k: (0, 0)),      # teacher bias (f32)
            pl.BlockSpec((tb, K_pad), lambda i, k: (i, 0)),     # class logits (bf16)
            pl.BlockSpec((tb, K_pad), lambda i, k: (i, 0)),     # dist logits  (bf16)
            pl.BlockSpec((tb, 1), lambda i, k: (i, 0)),         # labels       (int32)
        ],
        out_specs=pl.BlockSpec((tb, 1), lambda i, k: (i, 0)),   # per-row partial loss
        scratch_shapes=[pltpu.VMEM((tb, K_pad), jnp.float32)],  # teacher-logit acc
    )

    # VMEM limit derived from the chosen tiles and device capacity (with headroom).
    est = (2 * tb * td * 2 + 2 * td * K_pad * 2 + tb * K_pad * 4
           + 2 * 2 * tb * K_pad * 2 + 2 * K_pad * 4 + 4 * tb * 4)
    vmem_limit = int(min(max(2 * est, 16 << 20), (vmem_bytes * 9) // 10))

    cost = pl.CostEstimate(
        flops=2 * B * D * K_pad + 20 * B * K_pad,
        transcendentals=3 * B * K_pad,
        # W is re-streamed once per batch tile (nb x) -- the dominant HBM term.
        bytes_accessed=(B * D * 2 + nb * D * K_pad * 2 + 2 * B * K_pad * 2
                        + K_pad * 4 + B * 4 + B * 4),
    )

    per_row = pl.pallas_call(
        kernel,
        out_shape=jax.ShapeDtypeStruct((B, 1), jnp.float32),
        grid_spec=grid_spec,
        compiler_params=pltpu.CompilerParams(
            dimension_semantics=("parallel", "arbitrary"),
            vmem_limit_bytes=vmem_limit),
        cost_estimate=cost,
    )(x2d, w, b2d, out_bf, kd_bf, labels2d)
    return jnp.sum(per_row)


# ------------------------------------------------------------------------- reference
def _reference(inputs, outputs, outputs_kd, labels, teacher_w, teacher_b,
               *, alpha, tau):
    B = inputs.shape[0]
    K = outputs.shape[1]
    # Mirror the kernel's intentional bf16 streaming numerics (f32 accumulation/math).
    x = inputs.reshape(B, -1).astype(jnp.bfloat16)
    teacher = jnp.dot(x, teacher_w.astype(jnp.bfloat16),
                      preferred_element_type=jnp.float32) + teacher_b.astype(jnp.float32)
    out_f = outputs.astype(jnp.bfloat16).astype(jnp.float32)
    kd_f = outputs_kd.astype(jnp.bfloat16).astype(jnp.float32)

    lsm_out = jax.nn.log_softmax(out_f, axis=1)
    base = -jnp.mean(lsm_out[jnp.arange(B), labels])
    lp_s = jax.nn.log_softmax(kd_f / tau, axis=1)
    lp_t = jax.nn.log_softmax(teacher / tau, axis=1)
    kl = jnp.sum(jnp.exp(lp_t) * (lp_t - lp_s))
    distill = kl * (tau * tau) / (B * K)
    return base * (1.0 - alpha) + distill * alpha


# ------------------------------------------------------------------------------ demo
if __name__ == "__main__":
    alpha, tau = 0.5, 3.0
    key = jax.random.PRNGKey(0)

    def run_case(B, C, H, W, K, **tile_overrides):
        k_in, k_out, k_kd, k_lbl, k_w, k_b = jax.random.split(
            jax.random.fold_in(key, K), 6)
        D = C * H * W
        inputs = jax.random.normal(k_in, (B, C, H, W), jnp.float32)
        outputs = jax.random.normal(k_out, (B, K), jnp.float32)      # class token
        outputs_kd = jax.random.normal(k_kd, (B, K), jnp.float32)    # dist token
        labels = jax.random.randint(k_lbl, (B,), 0, K, jnp.int32)
        teacher_w = jax.random.normal(k_w, (D, K), jnp.float32) * (1.0 / (D ** 0.5))
        teacher_b = jax.random.normal(k_b, (K,), jnp.float32) * 0.01

        loss = distillation_loss(inputs, outputs, outputs_kd, labels,
                                 teacher_w, teacher_b, alpha=alpha, tau=tau,
                                 **tile_overrides)
        loss = jax.block_until_ready(loss)
        ref = _reference(inputs, outputs, outputs_kd, labels, teacher_w, teacher_b,
                         alpha=alpha, tau=tau)
        assert jnp.allclose(loss, ref, rtol=1e-4, atol=1e-4), (K, loss, ref)

    # Case 1: default (VMEM-budget-driven) tiling, 128-aligned class dim.
    run_case(16, 4, 16, 16, 128)
    # Case 2: forces a multi-step D reduction (td=256 -> 4 k-steps) and exercises the
    # class-dim padding/masking path (K=120 -> padded to 128).
    run_case(16, 4, 16, 16, 120, td=256)

    print("KERNEL_OK")
</pallas_src>

<mosaic_0001>
module attributes {stable_mosaic.version = 11 : i64} {
  func.func @_distill_kernel(%arg0: i32, %arg1: i32, %arg2: memref<16x1024xbf16, #tpu.memory_space<vmem>>, %arg3: memref<1024x128xbf16, #tpu.memory_space<vmem>>, %arg4: memref<1x128xf32, #tpu.memory_space<vmem>>, %arg5: memref<16x128xbf16, #tpu.memory_space<vmem>>, %arg6: memref<16x128xbf16, #tpu.memory_space<vmem>>, %arg7: memref<16x1xi32, #tpu.memory_space<vmem>>, %arg8: memref<16x1xf32, #tpu.memory_space<vmem>>, %arg9: memref<16x128xf32, #tpu.memory_space<vmem>>) attributes {dimension_semantics = [#tpu.dimension_semantics<parallel>, #tpu.dimension_semantics<arbitrary>], iteration_bounds = array<i64: 1, 1>, scalar_prefetch = 0 : i64, scratch_operands = 1 : i64, tpu.core_type = #tpu.core_type<tc>, window_params = [{transform_indices = @transform_0, window_bounds = array<i64: 16, 1024>}, {transform_indices = @transform_1, window_bounds = array<i64: 1024, 128>}, {pipeline_mode = #tpu.pipeline_mode<synchronous>, transform_indices = @transform_2, window_bounds = array<i64: 1, 128>}, {transform_indices = @transform_3, window_bounds = array<i64: 16, 128>}, {transform_indices = @transform_4, window_bounds = array<i64: 16, 128>}, {transform_indices = @transform_5, window_bounds = array<i64: 16, 1>}, {transform_indices = @transform_6, window_bounds = array<i64: 16, 1>}]} {
    %c0_i32 = arith.constant 0 : i32
    %0 = arith.cmpi eq, %arg1, %c0_i32 : i32
    %1 = arith.extui %0 : i1 to i32
    %c0_i32_0 = arith.constant 0 : i32
    %2 = arith.cmpi ne, %1, %c0_i32_0 : i32
    scf.if %2 {
      %c0_10 = arith.constant 0 : index
      %c0_11 = arith.constant 0 : index
      %12 = vector.load %arg4[%c0_10, %c0_11] : memref<1x128xf32, #tpu.memory_space<vmem>>, vector<1x128xf32>
      %13 = vector.shape_cast %12 : vector<1x128xf32> to vector<1x128xf32>
      %14 = vector.broadcast %13 : vector<1x128xf32> to vector<16x128xf32>
      %c0_12 = arith.constant 0 : index
      %c0_13 = arith.constant 0 : index
      %15 = vector.load %arg9[%c0_12, %c0_13] : memref<16x128xf32, #tpu.memory_space<vmem>>, vector<16x128xf32>
      tpu.vector_store %arg9[%c0_12, %c0_13], %14 {strides = array<i32>} : memref<16x128xf32, #tpu.memory_space<vmem>>, vector<16x128xf32>,
    } else {
    }
    %c0 = arith.constant 0 : index
    %c0_1 = arith.constant 0 : index
    %3 = vector.load %arg9[%c0, %c0_1] : memref<16x128xf32, #tpu.memory_space<vmem>>, vector<16x128xf32>
    %c0_2 = arith.constant 0 : index
    %c0_3 = arith.constant 0 : index
    %4 = vector.load %arg2[%c0_2, %c0_3] : memref<16x1024xbf16, #tpu.memory_space<vmem>>, vector<16x1024xbf16>
    %c0_4 = arith.constant 0 : index
    %c0_5 = arith.constant 0 : index
    %5 = vector.load %arg3[%c0_4, %c0_5] : memref<1024x128xbf16, #tpu.memory_space<vmem>>, vector<1024x128xbf16>
    %cst = arith.constant dense<0.000000e+00> : vector<16x128xf32>
    %6 = tpu.matmul %4, %5, %cst {dimension_numbers = #tpu.dot_dimension_numbers<[1], [0], [0], [1], [0, 0, 1, 1], [], []>} : vector<16x1024xbf16>, vector<1024x128xbf16>, vector<16x128xf32> -> vector<16x128xf32>
    %7 = arith.addf %3, %6 : vector<16x128xf32>
    %c0_6 = arith.constant 0 : index
    %c0_7 = arith.constant 0 : index
    %8 = vector.load %arg9[%c0_6, %c0_7] : memref<16x128xf32, #tpu.memory_space<vmem>>, vector<16x128xf32>
    tpu.vector_store %arg9[%c0_6, %c0_7], %7 {strides = array<i32>} : memref<16x128xf32, #tpu.memory_space<vmem>>, vector<16x128xf32>,
    %c0_i32_8 = arith.constant 0 : i32
    %9 = arith.cmpi eq, %arg1, %c0_i32_8 : i32
    %10 = arith.extui %9 : i1 to i32
    %c0_i32_9 = arith.constant 0 : i32
    %11 = arith.cmpi ne, %10, %c0_i32_9 : i32
    scf.if %11 {
      %c0_10 = arith.constant 0 : index
      %c0_11 = arith.constant 0 : index
      %12 = vector.load %arg9[%c0_10, %c0_11] : memref<16x128xf32, #tpu.memory_space<vmem>>, vector<16x128xf32>
      %c0_12 = arith.constant 0 : index
      %c0_13 = arith.constant 0 : index
      %13 = vector.load %arg5[%c0_12, %c0_13] : memref<16x128xbf16, #tpu.memory_space<vmem>>, vector<16x128xbf16>
      %14 = arith.extf %13 : vector<16x128xbf16> to vector<16x128xf32>
      %c0_14 = arith.constant 0 : index
      %c0_15 = arith.constant 0 : index
      %15 = vector.load %arg6[%c0_14, %c0_15] : memref<16x128xbf16, #tpu.memory_space<vmem>>, vector<16x128xbf16>
      %16 = arith.extf %15 : vector<16x128xbf16> to vector<16x128xf32>
      %c0_16 = arith.constant 0 : index
      %c0_17 = arith.constant 0 : index
      %17 = vector.load %arg7[%c0_16, %c0_17] : memref<16x1xi32, #tpu.memory_space<vmem>>, vector<16x1xi32>
      %cst_18 = arith.constant dense<0xFF800000> : vector<16xf32>
      %18 = vector.multi_reduction <maximumf>, %14, %cst_18 [1] : vector<16x128xf32> to vector<16xf32>
      %19 = vector.shape_cast %18 : vector<16xf32> to vector<16x1xf32>
      %20 = vector.broadcast %19 : vector<16x1xf32> to vector<16x128xf32>
      %21 = arith.subf %14, %20 : vector<16x128xf32>
      %22 = math.exp %21 : vector<16x128xf32>
      %cst_19 = arith.constant dense<0.000000e+00> : vector<16xf32>
      %23 = vector.multi_reduction <add>, %22, %cst_19 [1] : vector<16x128xf32> to vector<16xf32>
      %24 = vector.shape_cast %23 : vector<16xf32> to vector<16x1xf32>
      %25 = math.log %24 : vector<16x1xf32>
      %26 = arith.addf %19, %25 : vector<16x1xf32>
      %27 = tpu.iota {dimensions = array<i32: 1>} : vector<16x128xi32>
      %28 = vector.broadcast %17 : vector<16x1xi32> to vector<16x128xi32>
      %29 = arith.cmpi eq, %27, %28 : vector<16x128xi32>
      %cst_20 = arith.constant 0.000000e+00 : f32
      %30 = vector.broadcast %cst_20 : f32 to vector<16x128xf32>
      %31 = arith.select %29, %14, %30 : vector<16x128xi1>, vector<16x128xf32>
      %cst_21 = arith.constant dense<0.000000e+00> : vector<16xf32>
      %32 = vector.multi_reduction <add>, %31, %cst_21 [1] : vector<16x128xf32> to vector<16xf32>
      %33 = vector.shape_cast %32 : vector<16xf32> to vector<16x1xf32>
      %34 = arith.subf %26, %33 : vector<16x1xf32>
      %cst_22 = arith.constant 0.333333343 : f32
      %35 = vector.broadcast %cst_22 : f32 to vector<16x128xf32>
      %36 = arith.mulf %12, %35 : vector<16x128xf32>
      %cst_23 = arith.constant dense<0xFF800000> : vector<16xf32>
      %37 = vector.multi_reduction <maximumf>, %36, %cst_23 [1] : vector<16x128xf32> to vector<16xf32>
      %38 = vector.shape_cast %37 : vector<16xf32> to vector<16x1xf32>
      %39 = vector.broadcast %38 : vector<16x1xf32> to vector<16x128xf32>
      %40 = arith.subf %36, %39 : vector<16x128xf32>
      %41 = math.exp %40 : vector<16x128xf32>
      %cst_24 = arith.constant dense<0.000000e+00> : vector<16xf32>
      %42 = vector.multi_reduction <add>, %41, %cst_24 [1] : vector<16x128xf32> to vector<16xf32>
      %43 = vector.shape_cast %42 : vector<16xf32> to vector<16x1xf32>
      %44 = vector.broadcast %43 : vector<16x1xf32> to vector<16x128xf32>
      %45 = arith.divf %41, %44 : vector<16x128xf32>
      %46 = vector.broadcast %38 : vector<16x1xf32> to vector<16x128xf32>
      %47 = arith.subf %36, %46 : vector<16x128xf32>
      %48 = math.log %43 : vector<16x1xf32>
      %49 = vector.broadcast %48 : vector<16x1xf32> to vector<16x128xf32>
      %50 = arith.subf %47, %49 : vector<16x128xf32>
      %cst_25 = arith.constant 0.333333343 : f32
      %51 = vector.broadcast %cst_25 : f32 to vector<16x128xf32>
      %52 = arith.mulf %16, %51 : vector<16x128xf32>
      %cst_26 = arith.constant dense<0xFF800000> : vector<16xf32>
      %53 = vector.multi_reduction <maximumf>, %52, %cst_26 [1] : vector<16x128xf32> to vector<16xf32>
      %54 = vector.shape_cast %53 : vector<16xf32> to vector<16x1xf32>
      %55 = vector.broadcast %54 : vector<16x1xf32> to vector<16x128xf32>
      %56 = arith.subf %52, %55 : vector<16x128xf32>
      %57 = vector.broadcast %54 : vector<16x1xf32> to vector<16x128xf32>
      %58 = arith.subf %52, %57 : vector<16x128xf32>
      %59 = math.exp %58 : vector<16x128xf32>
      %cst_27 = arith.constant dense<0.000000e+00> : vector<16xf32>
      %60 = vector.multi_reduction <add>, %59, %cst_27 [1] : vector<16x128xf32> to vector<16xf32>
      %61 = vector.shape_cast %60 : vector<16xf32> to vector<16x1xf32>
      %62 = math.log %61 : vector<16x1xf32>
      %63 = vector.broadcast %62 : vector<16x1xf32> to vector<16x128xf32>
      %64 = arith.subf %56, %63 : vector<16x128xf32>
      %65 = arith.subf %50, %64 : vector<16x128xf32>
      %66 = arith.mulf %45, %65 : vector<16x128xf32>
      %cst_28 = arith.constant dense<0.000000e+00> : vector<16xf32>
      %67 = vector.multi_reduction <add>, %66, %cst_28 [1] : vector<16x128xf32> to vector<16xf32>
      %68 = vector.shape_cast %67 : vector<16xf32> to vector<16x1xf32>
      %cst_29 = arith.constant 3.125000e-02 : f32
      %69 = vector.broadcast %cst_29 : f32 to vector<16x1xf32>
      %70 = arith.mulf %69, %34 : vector<16x1xf32>
      %cst_30 = arith.constant 0.00219726563 : f32
      %71 = vector.broadcast %cst_30 : f32 to vector<16x1xf32>
      %72 = arith.mulf %71, %68 : vector<16x1xf32>
      %73 = arith.addf %70, %72 : vector<16x1xf32>
      %c0_31 = arith.constant 0 : index
      %c0_32 = arith.constant 0 : index
      %74 = vector.load %arg8[%c0_31, %c0_32] : memref<16x1xf32, #tpu.memory_space<vmem>>, vector<16x1xf32>
      tpu.vector_store %arg8[%c0_31, %c0_32], %73 {strides = array<i32>} : memref<16x1xf32, #tpu.memory_space<vmem>>, vector<16x1xf32>,
    } else {
    }
    return
  }
  func.func @transform_0(%arg0: i32, %arg1: i32) -> (i32, i32) {
    %c0_i32 = arith.constant 0 : i32
    return %arg0, %arg1 : i32, i32
  }
  func.func @transform_1(%arg0: i32, %arg1: i32) -> (i32, i32) {
    %c0_i32 = arith.constant 0 : i32
    %c0_i32_0 = arith.constant 0 : i32
    return %arg1, %c0_i32 : i32, i32
  }
  func.func @transform_2(%arg0: i32, %arg1: i32) -> (i32, i32) {
    %c0_i32 = arith.constant 0 : i32
    %c0_i32_0 = arith.constant 0 : i32
    %c0_i32_1 = arith.constant 0 : i32
    return %c0_i32, %c0_i32_0 : i32, i32
  }
  func.func @transform_3(%arg0: i32, %arg1: i32) -> (i32, i32) {
    %c0_i32 = arith.constant 0 : i32
    %c0_i32_0 = arith.constant 0 : i32
    return %arg0, %c0_i32 : i32, i32
  }
  func.func @transform_4(%arg0: i32, %arg1: i32) -> (i32, i32) {
    %c0_i32 = arith.constant 0 : i32
    %c0_i32_0 = arith.constant 0 : i32
    return %arg0, %c0_i32 : i32, i32
  }
  func.func @transform_5(%arg0: i32, %arg1: i32) -> (i32, i32) {
    %c0_i32 = arith.constant 0 : i32
    %c0_i32_0 = arith.constant 0 : i32
    return %arg0, %c0_i32 : i32, i32
  }
  func.func @transform_6(%arg0: i32, %arg1: i32) -> (i32, i32) {
    %c0_i32 = arith.constant 0 : i32
    %c0_i32_0 = arith.constant 0 : i32
    return %arg0, %c0_i32 : i32, i32
  }
}

</mosaic_0001>

<llo_original>
// kernel: tpu_custom_call.1
$region0: #{tpu_custom_call.1}
  #allocation0 [shape = 'u32[]', space=smem, size = 0x4, offset = 0x4, fixed_abs, tag = 'smem constant byte address 0x4 - core index']
  #allocation1 [shape = 'u32[144,128]{1,0:T(1,128)}', space=vmem, size = 0x12000, scoped, tag = 'internal scratch']
  #allocation2 [shape = 'f32[16,128]{1,0:T(8,128)}', space=vmem, size = 0x2000, scoped, tag = 'scratch operand']
  %s0 = inlined_call_operand.hbm [shape: bf16[16,1024], index: 0, kind: input, shape index: {}]
  %s1 = inlined_call_operand.hbm [shape: bf16[1024,128], index: 1, kind: input, shape index: {}]
  %s2 = inlined_call_operand.vmem [shape: f32[1,128], index: 2, kind: input, shape index: {}]
  %s3 = inlined_call_operand.vmem [shape: bf16[16,128], index: 3, kind: input, shape index: {}]
  %s4 = inlined_call_operand.vmem [shape: bf16[16,128], index: 4, kind: input, shape index: {}]
  %s5 = inlined_call_operand.vmem [shape: s32[16,1], index: 5, kind: input, shape index: {}]
  %s6 = inlined_call_operand.vmem [shape: f32[16,1], index: 6, kind: output, shape index: {}]
  %s7 = sld [smem:[#allocation0]]
  $region50: #{tpu_custom_call.1} parent=0
    _
  %s9 = ssub.s32 1, %s7
  %s10 = scalar_select 0, %s9, %s7
  $region1: #{tpu_custom_call.1} parent=0
    #allocation3 [shape = 'u8[32768]{0}', space=vmem, size = 0x8000, scoped, tag = 'input window, operand 0, single buffered']
    #allocation4 [shape = 's32[1]{0}', space=sflag, size = 0x4, scoped, tag = 'scoped memory for tpu_custom_call.1']
    #allocation5 [shape = 'u8[262144]{0}', space=vmem, size = 0x40000, scoped, tag = 'input window, operand 1, single buffered']
    #allocation6 [shape = 's32[1]{0}', space=sflag, size = 0x4, scoped, tag = 'scoped memory for tpu_custom_call.1']
    %11 = vsyncpa [#allocation4], 0
    %12 = vsyncpa [#allocation6], 0
    // Predicated region
    $region2: #{tpu_custom_call.1} parent=1 // pred_check
      _
    $region3: #{tpu_custom_call.1} parent=1 // pred_check_branch
      %14 = sbr.rel (0) target = $region5
    $region4: #{tpu_custom_call.1} parent=1 // pred_region
      %s16 = ssub.s32 1024, 1024
      %17 = vsyncadd [#allocation4], %s16
      %s18 = sshll.u32 [#allocation3], 4
      %s19 = int_to_ptr.vmem [resolvable:$true] %s18
      %24 = dma.hbm_to_vmem [thread:$0]  %s0, 1024, %s19, [#allocation4], 512, 512, 32
    $region5: #{tpu_custom_call.1} parent=1 // pred_fallthru
      _
    // Predicated region
    $region6: #{tpu_custom_call.1} parent=1 // pred_check
      _
    $region7: #{tpu_custom_call.1} parent=1 // pred_check_branch
      %26 = sbr.rel (0) target = $region9
    $region8: #{tpu_custom_call.1} parent=1 // pred_region
      %s28 = ssub.s32 8192, 8192
      %29 = vsyncadd [#allocation6], %s28
      %s30 = sshll.u32 [#allocation5], 4
      %s31 = int_to_ptr.vmem [resolvable:$true] %s30
      %36 = dma.hbm_to_vmem [thread:$0]  %s1, 8192, %s31, [#allocation6], 64, 64, 4
    $region9: #{tpu_custom_call.1} parent=1 // pred_fallthru
      _
    // Predicated region
    $region10: #{tpu_custom_call.1} parent=1 // pred_check
      _
    $region11: #{tpu_custom_call.1} parent=1 // pred_check_branch
      %38 = sbr.rel (0) target = $region13
    $region12: #{tpu_custom_call.1} parent=1 // pred_region
      _
    $region13: #{tpu_custom_call.1} parent=1 // pred_fallthru
      _
    // Predicated region
    $region14: #{tpu_custom_call.1} parent=1 // pred_check
      _
    $region15: #{tpu_custom_call.1} parent=1 // pred_check_branch
      %40 = sbr.rel (0) target = $region17
    $region16: #{tpu_custom_call.1} parent=1 // pred_region
      _
    $region17: #{tpu_custom_call.1} parent=1 // pred_fallthru
      _
    // Predicated region
    $region18: #{tpu_custom_call.1} parent=1 // pred_check
      _
    $region19: #{tpu_custom_call.1} parent=1 // pred_check_branch
      %42 = sbr.rel (0) target = $region21
    $region20: #{tpu_custom_call.1} parent=1 // pred_region
      _
    $region21: #{tpu_custom_call.1} parent=1 // pred_fallthru
      _
    // Predicated region
    $region22: #{tpu_custom_call.1} parent=1 // pred_check
      _
    $region23: #{tpu_custom_call.1} parent=1 // pred_check_branch
      %44 = sbr.rel (0) target = $region25
    $region24: #{tpu_custom_call.1} parent=1 // pred_region
      _
    $region25: #{tpu_custom_call.1} parent=1 // pred_fallthru
      _
    // Predicated region
    $region26: #{tpu_custom_call.1} parent=1 // pred_check
      _
    $region27: #{tpu_custom_call.1} parent=1 // pred_check_branch
      %46 = sbr.rel (0) target = $region29
    $region28: #{tpu_custom_call.1} parent=1 // pred_region
      %47 = dma.done [#allocation4], 1024
    $region29: #{tpu_custom_call.1} parent=1 // pred_fallthru
      _
    // Predicated region
    $region30: #{tpu_custom_call.1} parent=1 // pred_check
      _
    $region31: #{tpu_custom_call.1} parent=1 // pred_check_branch
      %49 = sbr.rel (0) target = $region33
    $region32: #{tpu_custom_call.1} parent=1 // pred_region
      %50 = dma.done [#allocation6], 8192
    $region33: #{tpu_custom_call.1} parent=1 // pred_fallthru
      _
    %p52 = scmp.eq.s32.totalorder 0, 0
    // Predicated region
    $region34: #{tpu_custom_call.1} parent=1 // pred_check
      %p53 = pneg %p52
    $region35: #{tpu_custom_call.1} parent=1 // pred_check_branch
      %55 = sbr.rel (%p53) target = $region37
    $region36: #{tpu_custom_call.1} parent=1 // pred_region
      %v56 = vld [vmem:[%s2] sm:$0x1]
      %v58 = vlaneseq
      %v59 = vshrl.u32 %v58, 7
      %v60 = vsub.s32 0, %v59
      %v61 = vrot.slane %v56, %v60
      %63 = vst [vmem:[#allocation2] sm:$0xff] %v61
      %64 = vst [vmem:[#allocation2 + $0x8] sm:$0xff] %v61
    $region37: #{tpu_custom_call.1} parent=1 // pred_fallthru
      _
    %v65 = vld [vmem:[#allocation2] sm:$0xff]
    %v66 = vld [vmem:[#allocation2 + $0x8] sm:$0xff]
    %v67 = vld [vmem:[#allocation3] sm:$0xff]
    %v68 = vld [vmem:[#allocation3 + $0x8] sm:$0xff]
    %v69 = vld [vmem:[#allocation3 + $0x10] sm:$0xff]
    %v70 = vld [vmem:[#allocation3 + $0x18] sm:$0xff]
    %v71 = vld [vmem:[#allocation3 + $0x20] sm:$0xff]
    %v72 = vld [vmem:[#allocation3 + $0x28] sm:$0xff]
    %v73 = vld [vmem:[#allocation3 + $0x30] sm:$0xff]
    %v74 = vld [vmem:[#allocation3 + $0x38] sm:$0xff]
    %v75 = vld [vmem:[#allocation5] sm:$0xf]
    %v76 = vld [vmem:[#allocation5 + $0x4] sm:$0xf]
    %v77 = vld [vmem:[#allocation5 + $0x8] sm:$0xf]
    %v78 = vld [vmem:[#allocation5 + $0xc] sm:$0xf]
    %v79 = vld [vmem:[#allocation5 + $0x10] sm:$0xf]
    %v80 = vld [vmem:[#allocation5 + $0x14] sm:$0xf]
    %v81 = vld [vmem:[#allocation5 + $0x18] sm:$0xf]
    %v82 = vld [vmem:[#allocation5 + $0x1c] sm:$0xf]
    %v83 = vld [vmem:[#allocation5 + $0x20] sm:$0xf]
    %v84 = vld [vmem:[#allocation5 + $0x24] sm:$0xf]
    %v85 = vld [vmem:[#allocation5 + $0x28] sm:$0xf]
    %v86 = vld [vmem:[#allocation5 + $0x2c] sm:$0xf]
    %v87 = vld [vmem:[#allocation5 + $0x30] sm:$0xf]
    %v88 = vld [vmem:[#allocation5 + $0x34] sm:$0xf]
    %v89 = vld [vmem:[#allocation5 + $0x38] sm:$0xf]
    %v90 = vld [vmem:[#allocation5 + $0x3c] sm:$0xf]
    %v91 = vld [vmem:[#allocation5 + $0x40] sm:$0xf]
    %v92 = vld [vmem:[#allocation5 + $0x44] sm:$0xf]
    %v93 = vld [vmem:[#allocation5 + $0x48] sm:$0xf]
    %v94 = vld [vmem:[#allocation5 + $0x4c] sm:$0xf]
    %v95 = vld [vmem:[#allocation5 + $0x50] sm:$0xf]
    %v96 = vld [vmem:[#allocation5 + $0x54] sm:$0xf]
    %v97 = vld [vmem:[#allocation5 + $0x58] sm:$0xf]
    %v98 = vld [vmem:[#allocation5 + $0x5c] sm:$0xf]
    %v99 = vld [vmem:[#allocation5 + $0x60] sm:$0xf]
    %v100 = vld [vmem:[#allocation5 + $0x64] sm:$0xf]
    %v101 = vld [vmem:[#allocation5 + $0x68] sm:$0xf]
    %v102 = vld [vmem:[#allocation5 + $0x6c] sm:$0xf]
    %v103 = vld [vmem:[#allocation5 + $0x70] sm:$0xf]
    %v104 = vld [vmem:[#allocation5 + $0x74] sm:$0xf]
    %v105 = vld [vmem:[#allocation5 + $0x78] sm:$0xf]
    %v106 = vld [vmem:[#allocation5 + $0x7c] sm:$0xf]
    %v107 = vld [vmem:[#allocation5 + $0x80] sm:$0xf]
    %v108 = vld [vmem:[#allocation5 + $0x84] sm:$0xf]
    %v109 = vld [vmem:[#allocation5 + $0x88] sm:$0xf]
    %v110 = vld [vmem:[#allocation5 + $0x8c] sm:$0xf]
    %v111 = vld [vmem:[#allocation5 + $0x90] sm:$0xf]
    %v112 = vld [vmem:[#allocation5 + $0x94] sm:$0xf]
    %v113 = vld [vmem:[#allocation5 + $0x98] sm:$0xf]
    %v114 = vld [vmem:[#allocation5 + $0x9c] sm:$0xf]
    %v115 = vld [vmem:[#allocation5 + $0xa0] sm:$0xf]
    %v116 = vld [vmem:[#allocation5 + $0xa4] sm:$0xf]
    %v117 = vld [vmem:[#allocation5 + $0xa8] sm:$0xf]
    %v118 = vld [vmem:[#allocation5 + $0xac] sm:$0xf]
    %v119 = vld [vmem:[#allocation5 + $0xb0] sm:$0xf]
    %v120 = vld [vmem:[#allocation5 + $0xb4] sm:$0xf]
    %v121 = vld [vmem:[#allocation5 + $0xb8] sm:$0xf]
    %v122 = vld [vmem:[#allocation5 + $0xbc] sm:$0xf]
    %v123 = vld [vmem:[#allocation5 + $0xc0] sm:$0xf]
    %v124 = vld [vmem:[#allocation5 + $0xc4] sm:$0xf]
    %v125 = vld [vmem:[#allocation5 + $0xc8] sm:$0xf]
    %v126 = vld [vmem:[#allocation5 + $0xcc] sm:$0xf]
    %v127 = vld [vmem:[#allocation5 + $0xd0] sm:$0xf]
    %v128 = vld [vmem:[#allocation5 + $0xd4] sm:$0xf]
    %v129 = vld [vmem:[#allocation5 + $0xd8] sm:$0xf]
    %v130 = vld [vmem:[#allocation5 + $0xdc] sm:$0xf]
    %v131 = vld [vmem:[#allocation5 + $0xe0] sm:$0xf]
    %v132 = vld [vmem:[#allocation5 + $0xe4] sm:$0xf]
    %v133 = vld [vmem:[#allocation5 + $0xe8] sm:$0xf]
    %v134 = vld [vmem:[#allocation5 + $0xec] sm:$0xf]
    %v135 = vld [vmem:[#allocation5 + $0xf0] sm:$0xf]
    %v136 = vld [vmem:[#allocation5 + $0xf4] sm:$0xf]
    %v137 = vld [vmem:[#allocation5 + $0xf8] sm:$0xf]
    %v138 = vld [vmem:[#allocation5 + $0xfc] sm:$0xf]
    %v139 = vld [vmem:[#allocation5 + $0x100] sm:$0xf]
    %v140 = vld [vmem:[#allocation5 + $0x104] sm:$0xf]
    %v141 = vld [vmem:[#allocation5 + $0x108] sm:$0xf]
    %v142 = vld [vmem:[#allocation5 + $0x10c] sm:$0xf]
    %v143 = vld [vmem:[#allocation5 + $0x110] sm:$0xf]
    %v144 = vld [vmem:[#allocation5 + $0x114] sm:$0xf]
    %v145 = vld [vmem:[#allocation5 + $0x118] sm:$0xf]
    %v146 = vld [vmem:[#allocation5 + $0x11c] sm:$0xf]
    %v147 = vld [vmem:[#allocation5 + $0x120] sm:$0xf]
    %v148 = vld [vmem:[#allocation5 + $0x124] sm:$0xf]
    %v149 = vld [vmem:[#allocation5 + $0x128] sm:$0xf]
    %v150 = vld [vmem:[#allocation5 + $0x12c] sm:$0xf]
    %v151 = vld [vmem:[#allocation5 + $0x130] sm:$0xf]
    %v152 = vld [vmem:[#allocation5 + $0x134] sm:$0xf]
    %v153 = vld [vmem:[#allocation5 + $0x138] sm:$0xf]
    %v154 = vld [vmem:[#allocation5 + $0x13c] sm:$0xf]
    %v155 = vld [vmem:[#allocation5 + $0x140] sm:$0xf]
    %v156 = vld [vmem:[#allocation5 + $0x144] sm:$0xf]
    %v157 = vld [vmem:[#allocation5 + $0x148] sm:$0xf]
    %v158 = vld [vmem:[#allocation5 + $0x14c] sm:$0xf]
    %v159 = vld [vmem:[#allocation5 + $0x150] sm:$0xf]
    %v160 = vld [vmem:[#allocation5 + $0x154] sm:$0xf]
    %v161 = vld [vmem:[#allocation5 + $0x158] sm:$0xf]
    %v162 = vld [vmem:[#allocation5 + $0x15c] sm:$0xf]
    %v163 = vld [vmem:[#allocation5 + $0x160] sm:$0xf]
    %v164 = vld [vmem:[#allocation5 + $0x164] sm:$0xf]
    %v165 = vld [vmem:[#allocation5 + $0x168] sm:$0xf]
    %v166 = vld [vmem:[#allocation5 + $0x16c] sm:$0xf]
    %v167 = vld [vmem:[#allocation5 + $0x170] sm:$0xf]
    %v168 = vld [vmem:[#allocation5 + $0x174] sm:$0xf]
    %v169 = vld [vmem:[#allocation5 + $0x178] sm:$0xf]
    %v170 = vld [vmem:[#allocation5 + $0x17c] sm:$0xf]
    %v171 = vld [vmem:[#allocation5 + $0x180] sm:$0xf]
    %v172 = vld [vmem:[#allocation5 + $0x184] sm:$0xf]
    %v173 = vld [vmem:[#allocation5 + $0x188] sm:$0xf]
    %v174 = vld [vmem:[#allocation5 + $0x18c] sm:$0xf]
    %v175 = vld [vmem:[#allocation5 + $0x190] sm:$0xf]
    %v176 = vld [vmem:[#allocation5 + $0x194] sm:$0xf]
    %v177 = vld [vmem:[#allocation5 + $0x198] sm:$0xf]
    %v178 = vld [vmem:[#allocation5 + $0x19c] sm:$0xf]
    %v179 = vld [vmem:[#allocation5 + $0x1a0] sm:$0xf]
    %v180 = vld [vmem:[#allocation5 + $0x1a4] sm:$0xf]
    %v181 = vld [vmem:[#allocation5 + $0x1a8] sm:$0xf]
    %v182 = vld [vmem:[#allocation5 + $0x1ac] sm:$0xf]
    %v183 = vld [vmem:[#allocation5 + $0x1b0] sm:$0xf]
    %v184 = vld [vmem:[#allocation5 + $0x1b4] sm:$0xf]
    %v185 = vld [vmem:[#allocation5 + $0x1b8] sm:$0xf]
    %v186 = vld [vmem:[#allocation5 + $0x1bc] sm:$0xf]
    %v187 = vld [vmem:[#allocation5 + $0x1c0] sm:$0xf]
    %v188 = vld [vmem:[#allocation5 + $0x1c4] sm:$0xf]
    %v189 = vld [vmem:[#allocation5 + $0x1c8] sm:$0xf]
    %v190 = vld [vmem:[#allocation5 + $0x1cc] sm:$0xf]
    %v191 = vld [vmem:[#allocation5 + $0x1d0] sm:$0xf]
    %v192 = vld [vmem:[#allocation5 + $0x1d4] sm:$0xf]
    %v193 = vld [vmem:[#allocation5 + $0x1d8] sm:$0xf]
    %v194 = vld [vmem:[#allocation5 + $0x1dc] sm:$0xf]
    %v195 = vld [vmem:[#allocation5 + $0x1e0] sm:$0xf]
    %v196 = vld [vmem:[#allocation5 + $0x1e4] sm:$0xf]
    %v197 = vld [vmem:[#allocation5 + $0x1e8] sm:$0xf]
    %v198 = vld [vmem:[#allocation5 + $0x1ec] sm:$0xf]
    %v199 = vld [vmem:[#allocation5 + $0x1f0] sm:$0xf]
    %v200 = vld [vmem:[#allocation5 + $0x1f4] sm:$0xf]
    %v201 = vld [vmem:[#allocation5 + $0x1f8] sm:$0xf]
    %v202 = vld [vmem:[#allocation5 + $0x1fc] sm:$0xf]
    %v211 = vunpack.c.l.b16 %v67
    %v212 = vunpack.c.h.b16 %v67
    %v213 = vunpack.c.l.b16 %v68
    %v214 = vunpack.c.h.b16 %v68
    %v215 = vunpack.c.l.b16 %v69
    %v216 = vunpack.c.h.b16 %v69
    %v217 = vunpack.c.l.b16 %v70
    %v218 = vunpack.c.h.b16 %v70
    %v219 = vunpack.c.l.b16 %v71
    %v220 = vunpack.c.h.b16 %v71
    %v221 = vunpack.c.l.b16 %v72
    %v222 = vunpack.c.h.b16 %v72
    %v223 = vunpack.c.l.b16 %v73
    %v224 = vunpack.c.h.b16 %v73
    %v225 = vunpack.c.l.b16 %v74
    %v226 = vunpack.c.h.b16 %v74
    %v227 = vpack.c.b16 %v219, %v211
    %v228 = vpack.c.b16 %v220, %v212
    %v229 = vpack.c.b16 %v221, %v213
    %v230 = vpack.c.b16 %v222, %v214
    %v231 = vpack.c.b16 %v223, %v215
    %v232 = vpack.c.b16 %v224, %v216
    %v233 = vpack.c.b16 %v225, %v217
    %v234 = vpack.c.b16 %v226, %v218
    %v371 = vunpack.c.l.b16 %v75
    %v372 = vunpack.c.l.b16 %v76
    %v373 = vunpack.c.l.b16 %v77
    %v374 = vunpack.c.l.b16 %v78
    %v375 = vunpack.c.l.b16 %v79
    %v376 = vunpack.c.l.b16 %v80
    %v377 = vunpack.c.l.b16 %v81
    %v378 = vunpack.c.l.b16 %v82
    %v379 = vunpack.c.l.b16 %v83
    %v380 = vunpack.c.l.b16 %v84
    %v381 = vunpack.c.l.b16 %v85
    %v382 = vunpack.c.l.b16 %v86
    %v383 = vunpack.c.l.b16 %v87
    %v384 = vunpack.c.l.b16 %v88
    %v385 = vunpack.c.l.b16 %v89
    %v386 = vunpack.c.l.b16 %v90
    %v387 = vunpack.c.l.b16 %v91
    %v388 = vunpack.c.l.b16 %v92
    %v389 = vunpack.c.l.b16 %v93
    %v390 = vunpack.c.l.b16 %v94
    %v391 = vunpack.c.l.b16 %v95
    %v392 = vunpack.c.l.b16 %v96
    %v393 = vunpack.c.l.b16 %v97
    %v394 = vunpack.c.l.b16 %v98
    %v395 = vunpack.c.l.b16 %v99
    %v396 = vunpack.c.l.b16 %v100
    %v397 = vunpack.c.l.b16 %v101
    %v398 = vunpack.c.l.b16 %v102
    %v399 = vunpack.c.l.b16 %v103
    %v400 = vunpack.c.l.b16 %v104
    %v401 = vunpack.c.l.b16 %v105
    %v402 = vunpack.c.l.b16 %v106
    %v403 = vunpack.c.l.b16 %v107
    %v404 = vunpack.c.l.b16 %v108
    %v405 = vunpack.c.l.b16 %v109
    %v406 = vunpack.c.l.b16 %v110
    %v407 = vunpack.c.l.b16 %v111
    %v408 = vunpack.c.l.b16 %v112
    %v409 = vunpack.c.l.b16 %v113
    %v410 = vunpack.c.l.b16 %v114
    %v411 = vunpack.c.l.b16 %v115
    %v412 = vunpack.c.l.b16 %v116
    %v413 = vunpack.c.l.b16 %v117
    %v414 = vunpack.c.l.b16 %v118
    %v415 = vunpack.c.l.b16 %v119
    %v416 = vunpack.c.l.b16 %v120
    %v417 = vunpack.c.l.b16 %v121
    %v418 = vunpack.c.l.b16 %v122
    %v419 = vunpack.c.l.b16 %v123
    %v420 = vunpack.c.l.b16 %v124
    %v421 = vunpack.c.l.b16 %v125
    %v422 = vunpack.c.l.b16 %v126
    %v423 = vunpack.c.l.b16 %v127
    %v424 = vunpack.c.l.b16 %v128
    %v425 = vunpack.c.l.b16 %v129
    %v426 = vunpack.c.l.b16 %v130
    %v427 = vunpack.c.l.b16 %v131
    %v428 = vunpack.c.l.b16 %v132
    %v429 = vunpack.c.l.b16 %v133
    %v430 = vunpack.c.l.b16 %v134
    %v431 = vunpack.c.l.b16 %v135
    %v432 = vunpack.c.l.b16 %v136
    %v433 = vunpack.c.l.b16 %v137
    %v434 = vunpack.c.l.b16 %v138
    %v435 = vunpack.c.l.b16 %v139
    %v436 = vunpack.c.l.b16 %v140
    %v437 = vunpack.c.l.b16 %v141
    %v438 = vunpack.c.l.b16 %v142
    %v439 = vunpack.c.l.b16 %v143
    %v440 = vunpack.c.l.b16 %v144
    %v441 = vunpack.c.l.b16 %v145
    %v442 = vunpack.c.l.b16 %v146
    %v443 = vunpack.c.l.b16 %v147
    %v444 = vunpack.c.l.b16 %v148
    %v445 = vunpack.c.l.b16 %v149
    %v446 = vunpack.c.l.b16 %v150
    %v447 = vunpack.c.l.b16 %v151
    %v448 = vunpack.c.l.b16 %v152
    %v449 = vunpack.c.l.b16 %v153
    %v450 = vunpack.c.l.b16 %v154
    %v451 = vunpack.c.l.b16 %v155
    %v452 = vunpack.c.l.b16 %v156
    %v453 = vunpack.c.l.b16 %v157
    %v454 = vunpack.c.l.b16 %v158
    %v455 = vunpack.c.l.b16 %v159
    %v456 = vunpack.c.l.b16 %v160
    %v457 = vunpack.c.l.b16 %v161
    %v458 = vunpack.c.l.b16 %v162
    %v459 = vunpack.c.l.b16 %v163
    %v460 = vunpack.c.l.b16 %v164
    %v461 = vunpack.c.l.b16 %v165
    %v462 = vunpack.c.l.b16 %v166
    %v463 = vunpack.c.l.b16 %v167
    %v464 = vunpack.c.l.b16 %v168
    %v465 = vunpack.c.l.b16 %v169
    %v466 = vunpack.c.l.b16 %v170
    %v467 = vunpack.c.l.b16 %v171
    %v468 = vunpack.c.l.b16 %v172
    %v469 = vunpack.c.l.b16 %v173
    %v470 = vunpack.c.l.b16 %v174
    %v471 = vunpack.c.l.b16 %v175
    %v472 = vunpack.c.l.b16 %v176
    %v473 = vunpack.c.l.b16 %v177
    %v474 = vunpack.c.l.b16 %v178
    %v475 = vunpack.c.l.b16 %v179
    %v476 = vunpack.c.l.b16 %v180
    %v477 = vunpack.c.l.b16 %v181
    %v478 = vunpack.c.l.b16 %v182
    %v479 = vunpack.c.l.b16 %v183
    %v480 = vunpack.c.l.b16 %v184
    %v481 = vunpack.c.l.b16 %v185
    %v482 = vunpack.c.l.b16 %v186
    %v483 = vunpack.c.l.b16 %v187
    %v484 = vunpack.c.l.b16 %v188
    %v485 = vunpack.c.l.b16 %v189
    %v486 = vunpack.c.l.b16 %v190
    %v487 = vunpack.c.l.b16 %v191
    %v488 = vunpack.c.l.b16 %v192
    %v489 = vunpack.c.l.b16 %v193
    %v490 = vunpack.c.l.b16 %v194
    %v491 = vunpack.c.l.b16 %v195
    %v492 = vunpack.c.l.b16 %v196
    %v493 = vunpack.c.l.b16 %v197
    %v494 = vunpack.c.l.b16 %v198
    %v495 = vunpack.c.l.b16 %v199
    %v496 = vunpack.c.l.b16 %v200
    %v497 = vunpack.c.l.b16 %v201
    %v498 = vunpack.c.l.b16 %v202
    %v499 = vpack.c.b16 %v372, %v371
    %v500 = vpack.c.b16 %v374, %v373
    %v501 = vpack.c.b16 %v376, %v375
    %v502 = vpack.c.b16 %v378, %v377
    %v503 = vpack.c.b16 %v380, %v379
    %v504 = vpack.c.b16 %v382, %v381
    %v505 = vpack.c.b16 %v384, %v383
    %v506 = vpack.c.b16 %v386, %v385
    %v507 = vpack.c.b16 %v388, %v387
    %v508 = vpack.c.b16 %v390, %v389
    %v509 = vpack.c.b16 %v392, %v391
    %v510 = vpack.c.b16 %v394, %v393
    %v511 = vpack.c.b16 %v396, %v395
    %v512 = vpack.c.b16 %v398, %v397
    %v513 = vpack.c.b16 %v400, %v399
    %v514 = vpack.c.b16 %v402, %v401
    %v515 = vpack.c.b16 %v404, %v403
    %v516 = vpack.c.b16 %v406, %v405
    %v517 = vpack.c.b16 %v408, %v407
    %v518 = vpack.c.b16 %v410, %v409
    %v519 = vpack.c.b16 %v412, %v411
    %v520 = vpack.c.b16 %v414, %v413
    %v521 = vpack.c.b16 %v416, %v415
    %v522 = vpack.c.b16 %v418, %v417
    %v523 = vpack.c.b16 %v420, %v419
    %v524 = vpack.c.b16 %v422, %v421
    %v525 = vpack.c.b16 %v424, %v423
    %v526 = vpack.c.b16 %v426, %v425
    %v527 = vpack.c.b16 %v428, %v427
    %v528 = vpack.c.b16 %v430, %v429
    %v529 = vpack.c.b16 %v432, %v431
    %v530 = vpack.c.b16 %v434, %v433
    %v531 = vpack.c.b16 %v436, %v435
    %v532 = vpack.c.b16 %v438, %v437
    %v533 = vpack.c.b16 %v440, %v439
    %v534 = vpack.c.b16 %v442, %v441
    %v535 = vpack.c.b16 %v444, %v443
    %v536 = vpack.c.b16 %v446, %v445
    %v537 = vpack.c.b16 %v448, %v447
    %v538 = vpack.c.b16 %v450, %v449
    %v539 = vpack.c.b16 %v452, %v451
    %v540 = vpack.c.b16 %v454, %v453
    %v541 = vpack.c.b16 %v456, %v455
    %v542 = vpack.c.b16 %v458, %v457
    %v543 = vpack.c.b16 %v460, %v459
    %v544 = vpack.c.b16 %v462, %v461
    %v545 = vpack.c.b16 %v464, %v463
    %v546 = vpack.c.b16 %v466, %v465
    %v547 = vpack.c.b16 %v468, %v467
    %v548 = vpack.c.b16 %v470, %v469
    %v549 = vpack.c.b16 %v472, %v471
    %v550 = vpack.c.b16 %v474, %v473
    %v551 = vpack.c.b16 %v476, %v475
    %v552 = vpack.c.b16 %v478, %v477
    %v553 = vpack.c.b16 %v480, %v479
    %v554 = vpack.c.b16 %v482, %v481
    %v555 = vpack.c.b16 %v484, %v483
    %v556 = vpack.c.b16 %v486, %v485
    %v557 = vpack.c.b16 %v488, %v487
    %v558 = vpack.c.b16 %v490, %v489
    %v559 = vpack.c.b16 %v492, %v491
    %v560 = vpack.c.b16 %v494, %v493
    %v561 = vpack.c.b16 %v496, %v495
    %v562 = vpack.c.b16 %v498, %v497
    %627 = vmatprep.subr.bf16.mxu0 0
    %628 = vmatpush1.bf16.msra.mxu0 %v506
    %629 = vmatprep.subr.bf16.mxu0 0
    %630 = vmatpush1.bf16.msra.mxu0 %v505
    %631 = vmatprep.subr.bf16.mxu0 0
    %632 = vmatpush1.bf16.msra.mxu0 %v504
    %633 = vmatprep.subr.bf16.mxu0 0
    %634 = vmatpush1.bf16.msra.mxu0 %v503
    %635 = vmatprep.subr.bf16.mxu0 0
    %636 = vmatpush1.bf16.msra.mxu0 %v502
    %637 = vmatprep.subr.bf16.mxu0 0
    %638 = vmatpush1.bf16.msra.mxu0 %v501
    %639 = vmatprep.subr.bf16.mxu0 0
    %640 = vmatpush1.bf16.msra.mxu0 %v500
    %641 = vmatprep.subr.bf16.mxu0 0
    %642 = vmatpush1.bf16.msra.mxu0 %v499
    %643 = vmatprep.subr.bf16.mxu0 0
    %644 = vmatpush2.bf16.msra.mxu0 %v514
    %645 = vmatprep.subr.bf16.mxu0 0
    %646 = vmatpush2.bf16.msra.mxu0 %v513
    %647 = vmatprep.subr.bf16.mxu0 0
    %648 = vmatpush2.bf16.msra.mxu0 %v512
    %649 = vmatprep.subr.bf16.mxu0 0
    %650 = vmatpush2.bf16.msra.mxu0 %v511
    %651 = vmatprep.subr.bf16.mxu0 0
    %652 = vmatpush2.bf16.msra.mxu0 %v510
    %653 = vmatprep.subr.bf16.mxu0 0
    %654 = vmatpush2.bf16.msra.mxu0 %v509
    %655 = vmatprep.subr.bf16.mxu0 0
    %656 = vmatpush2.bf16.msra.mxu0 %v508
    %657 = vmatprep.subr.bf16.mxu0 0
    %658 = vmatpush2.bf16.msra.mxu0 %v507
    %659 = vmatprep.mubr.bf16.mxu0 %v228
    %660 = vmatmul.mubr.bf16.gmra.mxu0 %v227
    %v661 = vpop.f32.mrf.mxu0
    %v662 = vadd.f32 0.0, %v661
    %v663 = vpop.f32.mrf.mxu0
    %v664 = vpop.f32.mrf.mxu0
    %v665 = vadd.f32 0.0, %v664
    %v666 = vpop.f32.mrf.mxu0
    %667 = vdwg.mxu0
    %668 = vmatprep.subr.bf16.mxu0 0
    %669 = vmatpush1.bf16.msra.mxu0 %v522
    %670 = vmatprep.subr.bf16.mxu0 0
    %671 = vmatpush1.bf16.msra.mxu0 %v521
    %672 = vmatprep.subr.bf16.mxu0 0
    %673 = vmatpush1.bf16.msra.mxu0 %v520
    %674 = vmatprep.subr.bf16.mxu0 0
    %675 = vmatpush1.bf16.msra.mxu0 %v519
    %676 = vmatprep.subr.bf16.mxu0 0
    %677 = vmatpush1.bf16.msra.mxu0 %v518
    %678 = vmatprep.subr.bf16.mxu0 0
    %679 = vmatpush1.bf16.msra.mxu0 %v517
    %680 = vmatprep.subr.bf16.mxu0 0
    %681 = vmatpush1.bf16.msra.mxu0 %v516
    %682 = vmatprep.subr.bf16.mxu0 0
    %683 = vmatpush1.bf16.msra.mxu0 %v515
    %684 = vmatprep.subr.bf16.mxu0 0
    %685 = vmatpush2.bf16.msra.mxu0 %v530
    %686 = vmatprep.subr.bf16.mxu0 0
    %687 = vmatpush2.bf16.msra.mxu0 %v529
    %688 = vmatprep.subr.bf16.mxu0 0
    %689 = vmatpush2.bf16.msra.mxu0 %v528
    %690 = vmatprep.subr.bf16.mxu0 0
    %691 = vmatpush2.bf16.msra.mxu0 %v527
    %692 = vmatprep.subr.bf16.mxu0 0
    %693 = vmatpush2.bf16.msra.mxu0 %v526
    %694 = vmatprep.subr.bf16.mxu0 0
    %695 = vmatpush2.bf16.msra.mxu0 %v525
    %696 = vmatprep.subr.bf16.mxu0 0
    %697 = vmatpush2.bf16.msra.mxu0 %v524
    %698 = vmatprep.subr.bf16.mxu0 0
    %699 = vmatpush2.bf16.msra.mxu0 %v523
    %700 = vmatprep.mubr.bf16.mxu0 %v230
    %701 = vmatmul.mubr.bf16.gmra.mxu0 %v229
    %v702 = vpop.f32.mrf.mxu0
    %v703 = vadd.f32 %v662, %v702
    %v704 = vpop.f32.mrf.mxu0
    %v705 = vpop.f32.mrf.mxu0
    %v706 = vadd.f32 %v665, %v705
    %v707 = vpop.f32.mrf.mxu0
    %708 = vdwg.mxu0
    %709 = vmatprep.subr.bf16.mxu0 0
    %710 = vmatpush1.bf16.msra.mxu0 %v538
    %711 = vmatprep.subr.bf16.mxu0 0
    %712 = vmatpush1.bf16.msra.mxu0 %v537
    %713 = vmatprep.subr.bf16.mxu0 0
    %714 = vmatpush1.bf16.msra.mxu0 %v536
    %715 = vmatprep.subr.bf16.mxu0 0
    %716 = vmatpush1.bf16.msra.mxu0 %v535
    %717 = vmatprep.subr.bf16.mxu0 0
    %718 = vmatpush1.bf16.msra.mxu0 %v534
    %719 = vmatprep.subr.bf16.mxu0 0
    %720 = vmatpush1.bf16.msra.mxu0 %v533
    %721 = vmatprep.subr.bf16.mxu0 0
    %722 = vmatpush1.bf16.msra.mxu0 %v532
    %723 = vmatprep.subr.bf16.mxu0 0
    %724 = vmatpush1.bf16.msra.mxu0 %v531
    %725 = vmatprep.subr.bf16.mxu0 0
    %726 = vmatpush2.bf16.msra.mxu0 %v546
    %727 = vmatprep.subr.bf16.mxu0 0
    %728 = vmatpush2.bf16.msra.mxu0 %v545
    %729 = vmatprep.subr.bf16.mxu0 0
    %730 = vmatpush2.bf16.msra.mxu0 %v544
    %731 = vmatprep.subr.bf16.mxu0 0
    %732 = vmatpush2.bf16.msra.mxu0 %v543
    %733 = vmatprep.subr.bf16.mxu0 0
    %734 = vmatpush2.bf16.msra.mxu0 %v542
    %735 = vmatprep.subr.bf16.mxu0 0
    %736 = vmatpush2.bf16.msra.mxu0 %v541
    %737 = vmatprep.subr.bf16.mxu0 0
    %738 = vmatpush2.bf16.msra.mxu0 %v540
    %739 = vmatprep.subr.bf16.mxu0 0
    %740 = vmatpush2.bf16.msra.mxu0 %v539
    %741 = vmatprep.mubr.bf16.mxu0 %v232
    %742 = vmatmul.mubr.bf16.gmra.mxu0 %v231
    %v743 = vpop.f32.mrf.mxu0
    %v744 = vadd.f32 %v703, %v743
    %v745 = vpop.f32.mrf.mxu0
    %v746 = vpop.f32.mrf.mxu0
    %v747 = vadd.f32 %v706, %v746
    %v748 = vpop.f32.mrf.mxu0
    %749 = vdwg.mxu0
    %750 = vmatprep.subr.bf16.mxu0 0
    %751 = vmatpush1.bf16.msra.mxu0 %v554
    %752 = vmatprep.subr.bf16.mxu0 0
    %753 = vmatpush1.bf16.msra.mxu0 %v553
    %754 = vmatprep.subr.bf16.mxu0 0
    %755 = vmatpush1.bf16.msra.mxu0 %v552
    %756 = vmatprep.subr.bf16.mxu0 0
    %757 = vmatpush1.bf16.msra.mxu0 %v551
    %758 = vmatprep.subr.bf16.mxu0 0
    %759 = vmatpush1.bf16.msra.mxu0 %v550
    %760 = vmatprep.subr.bf16.mxu0 0
    %761 = vmatpush1.bf16.msra.mxu0 %v549
    %762 = vmatprep.subr.bf16.mxu0 0
    %763 = vmatpush1.bf16.msra.mxu0 %v548
    %764 = vmatprep.subr.bf16.mxu0 0
    %765 = vmatpush1.bf16.msra.mxu0 %v547
    %766 = vmatprep.subr.bf16.mxu0 0
    %767 = vmatpush2.bf16.msra.mxu0 %v562
    %768 = vmatprep.subr.bf16.mxu0 0
    %769 = vmatpush2.bf16.msra.mxu0 %v561
    %770 = vmatprep.subr.bf16.mxu0 0
    %771 = vmatpush2.bf16.msra.mxu0 %v560
    %772 = vmatprep.subr.bf16.mxu0 0
    %773 = vmatpush2.bf16.msra.mxu0 %v559
    %774 = vmatprep.subr.bf16.mxu0 0
    %775 = vmatpush2.bf16.msra.mxu0 %v558
    %776 = vmatprep.subr.bf16.mxu0 0
    %777 = vmatpush2.bf16.msra.mxu0 %v557
    %778 = vmatprep.subr.bf16.mxu0 0
    %779 = vmatpush2.bf16.msra.mxu0 %v556
    %780 = vmatprep.subr.bf16.mxu0 0
    %781 = vmatpush2.bf16.msra.mxu0 %v555
    %782 = vmatprep.mubr.bf16.mxu0 %v234
    %783 = vmatmul.mubr.bf16.gmra.mxu0 %v233
    %v784 = vpop.f32.mrf.mxu0
    %v785 = vadd.f32 %v744, %v784
    %v786 = vpop.f32.mrf.mxu0
    %v787 = vpop.f32.mrf.mxu0
    %v788 = vadd.f32 %v747, %v787
    %v789 = vpop.f32.mrf.mxu0
    %790 = vdwg.mxu0
    %v791 = vadd.f32 %v65, %v785
    %v792 = vadd.f32 %v66, %v788
    %793 = vst [vmem:[#allocation2] sm:$0xff] %v791
    %794 = vst [vmem:[#allocation2 + $0x8] sm:$0xff] %v792
    // Predicated region
    $region38: #{tpu_custom_call.1} parent=1 // pred_check
      %p795 = pneg %p52
    $region39: #{tpu_custom_call.1} parent=1 // pred_check_branch
      %797 = sbr.rel (%p795) target = $region41
    $region40: #{tpu_custom_call.1} parent=1 // pred_region
      %v798 = vld [vmem:[#allocation2] sm:$0xff]
      %v799 = vld [vmem:[#allocation2 + $0x8] sm:$0xff]
      %v800 = vld [vmem:[%s3] sm:$0xf]
      %v801 = vld [vmem:[%s3 + $0x4] sm:$0xf]
      %v802 = vunpack.c.l.bf16 %v800
      %v803 = vunpack.c.l.bf16 %v801
      %v804 = vld [vmem:[%s4] sm:$0xf]
      %v805 = vld [vmem:[%s4 + $0x4] sm:$0xf]
      %v806 = vunpack.c.l.bf16 %v804
      %v807 = vunpack.c.l.bf16 %v805
      %v808 = vld [vmem:[%s5] sm:$0xff]
      %v809 = vld [vmem:[%s5 + $0x8] sm:$0xff]
      %810 = vmax.xlane.f32.xlu0 %v802
      %v811 = vpop.xlane.xlu0 %810
      %812 = vmax.xlane.f32.xlu0 %v803
      %v813 = vpop.xlane.xlu0 %812
      %v814 = vsub.f32 %v802, %v811
      %v815 = vsub.f32 %v803, %v813
      %v816 = vmul.f32 %v814, 1.442695
      %v817 = vpow.pop %v816
      %v818 = vmul.f32 %v815, 1.442695
      %v819 = vpow.pop %v818
      %820 = vadd.xlane.f32.xlu0 %v817
      %v821 = vpop.xlane.xlu0 %820
      %822 = vadd.xlane.f32.xlu0 %v819
      %v823 = vpop.xlane.xlu0 %822
      %v824 = vlog2.pop %v821
      %v825 = vmul.f32 %v824, 0.6931472
      %v826 = vlog2.pop %v823
      %v827 = vmul.f32 %v826, 0.6931472
      %v828 = vadd.f32 %v811, %v825
      %v829 = vadd.f32 %v813, %v827
      %v830 = vlaneseq
      %v831 = vand.u32 %v830, 127
      %832 = vset.pattern.permute.xlu0 0
      %833 = vperm.xlu0 %832, %v808
      %v834 = vpop.permute.xlu0 %833
      %835 = vset.pattern.permute.xlu0 0
      %836 = vperm.xlu0 %835, %v809
      %v837 = vpop.permute.xlu0 %836
      %vm838 = vcmp.eq.s32.totalorder %v831, %v834
      %vm839 = vcmp.eq.s32.totalorder %v831, %v837
      %v840 = vsel %vm838, %v802, 0.0
      %v841 = vsel %vm839, %v803, 0.0
      %842 = vadd.xlane.f32.xlu0 %v840
      %v843 = vpop.xlane.xlu0 %842
      %844 = vadd.xlane.f32.xlu0 %v841
      %v845 = vpop.xlane.xlu0 %844
      %v846 = vsub.f32 %v828, %v843
      %v847 = vsub.f32 %v829, %v845
      %v848 = vmul.f32 %v798, 0.33333334
      %v849 = vmul.f32 %v799, 0.33333334
      %850 = vmax.xlane.f32.xlu0 %v848
      %v851 = vpop.xlane.xlu0 %850
      %852 = vmax.xlane.f32.xlu0 %v849
      %v853 = vpop.xlane.xlu0 %852
      %v854 = vsub.f32 %v848, %v851
      %v855 = vsub.f32 %v849, %v853
      %v856 = vmul.f32 %v854, 1.442695
      %v857 = vpow.pop %v856
      %v858 = vmul.f32 %v855, 1.442695
      %v859 = vpow.pop %v858
      %860 = vadd.xlane.f32.xlu0 %v857
      %v861 = vpop.xlane.xlu0 %860
      %862 = vadd.xlane.f32.xlu0 %v859
      %v863 = vpop.xlane.xlu0 %862
      %v864 = vrcp.pop %v861
      %v865 = vmul.f32 %v857, %v864
      %v866 = vrcp.pop %v863
      %v867 = vmul.f32 %v859, %v866
      %v868 = vlog2.pop %v861
      %v869 = vmul.f32 %v868, 0.6931472
      %v870 = vlog2.pop %v863
      %v871 = vmul.f32 %v870, 0.6931472
      %v872 = vsub.f32 %v854, %v869
      %v873 = vsub.f32 %v855, %v871
      %v874 = vmul.f32 %v806, 0.33333334
      %v875 = vmul.f32 %v807, 0.33333334
      %876 = vmax.xlane.f32.xlu0 %v874
      %v877 = vpop.xlane.xlu0 %876
      %878 = vmax.xlane.f32.xlu0 %v875
      %v879 = vpop.xlane.xlu0 %878
      %v880 = vsub.f32 %v874, %v877
      %v881 = vsub.f32 %v875, %v879
      %v882 = vmul.f32 %v880, 1.442695
      %v883 = vpow.pop %v882
      %v884 = vmul.f32 %v881, 1.442695
      %v885 = vpow.pop %v884
      %886 = vadd.xlane.f32.xlu0 %v883
      %v887 = vpop.xlane.xlu0 %886
      %888 = vadd.xlane.f32.xlu0 %v885
      %v889 = vpop.xlane.xlu0 %888
      %v890 = vlog2.pop %v887
      %v891 = vmul.f32 %v890, 0.6931472
      %v892 = vlog2.pop %v889
      %v893 = vmul.f32 %v892, 0.6931472
      %v894 = vsub.f32 %v880, %v891
      %v895 = vsub.f32 %v881, %v893
      %v896 = vsub.f32 %v872, %v894
      %v897 = vsub.f32 %v873, %v895
      %v898 = vmul.f32 %v865, %v896
      %v899 = vmul.f32 %v867, %v897
      %900 = vadd.xlane.f32.xlu0 %v898
      %v901 = vpop.xlane.xlu0 %900
      %902 = vadd.xlane.f32.xlu0 %v899
      %v903 = vpop.xlane.xlu0 %902
      %v904 = vmul.f32 %v846, 0.03125
      %v905 = vmul.f32 %v847, 0.03125
      %v906 = vmul.f32 %v901, 0.0021972656
      %v907 = vmul.f32 %v903, 0.0021972656
      %v908 = vadd.f32 %v904, %v906
      %v909 = vadd.f32 %v905, %v907
      %vm910 = vcmask 7168
      %911 = vst.msk [vmem:[%s6] sm:$0xff] %vm910, %v908
      %912 = vst.msk [vmem:[%s6 + $0x8] sm:$0xff] %vm910, %v909
    $region41: #{tpu_custom_call.1} parent=1 // pred_fallthru
      _
    // Predicated region
    $region42: #{tpu_custom_call.1} parent=1 // pred_check
      _
    $region43: #{tpu_custom_call.1} parent=1 // pred_check_branch
      %914 = sbr.rel (0) target = $region45
    $region44: #{tpu_custom_call.1} parent=1 // pred_region
      _
    $region45: #{tpu_custom_call.1} parent=1 // pred_fallthru
      _
    // Predicated region
    $region46: #{tpu_custom_call.1} parent=1 // pred_check
      _
    $region47: #{tpu_custom_call.1} parent=1 // pred_check_branch
      %916 = sbr.rel (0) target = $region49
    $region48: #{tpu_custom_call.1} parent=1 // pred_region
      _
    $region49: #{tpu_custom_call.1} parent=1 // pred_fallthru
      _
    %917 = vsyncpa [#allocation4], 1
    %918 = vsyncpa [#allocation6], 1

</llo_original>
